<compile_context>
chip_gen: v5e
topology: v5e:2x2
jax: 0.10.0
libtpu: 0.0.40
codegen_flags: <defaults>
</compile_context>

<pallas_src>
import jax
import jax.numpy as jnp
from jax.experimental import pallas as pl
from jax.experimental.pallas import tpu as pltpu


def regressor_kernel(x_ref, w1_ref, b1_ref, w2_ref, b2_ref, w3_ref, b3_ref, o_ref):
    # x_ref:  (tb, n_dim) bf16        w1_ref: (n_dim, 128) bf16   b1_ref: (1, 128) f32
    # w2_ref: (128, 128)  bf16        b2_ref: (1, 128) f32
    # w3_ref: (1, 128)    f32         b3_ref: (1,) f32 in SMEM
    # o_ref:  (1, tb)     f32  (lane-dense: batch on the lane axis)
    x = x_ref[...]
    h1 = jnp.dot(x, w1_ref[...], preferred_element_type=jnp.float32)         # [tb, 128]  MXU
    h1 = jnp.maximum(h1 + b1_ref[...], 0.0)                                   # ReLU (drop1 = identity)
    h2 = jnp.dot(h1.astype(jnp.bfloat16), w2_ref[...],
                 preferred_element_type=jnp.float32)                          # [tb, 128]  MXU
    h2 = jnp.maximum(h2 + b2_ref[...], 0.0)                                   # ReLU (drop2 = identity)
    # Output layer (N=1): elementwise multiply + lane reduce rides VPU/XLU instead of MXU.
    out = jnp.sum(h2 * w3_ref[...], axis=-1) + b3_ref[0]                      # [tb]
    o_ref[...] = out[None, :].astype(o_ref.dtype)                             # (1, tb), lane-dense


def _round_up(x, m):
    return (x + m - 1) // m * m


def regressor_forward(x, w1, b1, w2, b2, w3, b3, *, block_b=512):
    """Forward pass.  Weights are stored transposed vs. PyTorch: (in_features, out_features)."""
    B, n_dim = x.shape
    H1 = w1.shape[1]   # 64
    H2 = w2.shape[1]   # 32
    H1p = _round_up(H1, 128)
    H2p = _round_up(H2, 128)

    # Batch tile: multiple of 128 (lane-dense output rows), large enough for good pipelining.
    tb = min(_round_up(block_b, 128), _round_up(B, 128))
    B_pad = _round_up(B, tb)
    grid = (B_pad // tb,)

    # bf16 matmul operands (f32 accumulation in kernel); zero-pad hidden widths to 128 lanes.
    xp = jnp.zeros((B_pad, n_dim), jnp.bfloat16).at[:B].set(x.astype(jnp.bfloat16))
    w1p = jnp.zeros((n_dim, H1p), jnp.bfloat16).at[:, :H1].set(w1.astype(jnp.bfloat16))
    w2p = jnp.zeros((H1p, H2p), jnp.bfloat16).at[:H1, :H2].set(w2.astype(jnp.bfloat16))
    b1p = jnp.zeros((1, H1p), jnp.float32).at[:, :H1].set(b1.reshape(1, H1).astype(jnp.float32))
    b2p = jnp.zeros((1, H2p), jnp.float32).at[:, :H2].set(b2.reshape(1, H2).astype(jnp.float32))
    w3p = jnp.zeros((1, H2p), jnp.float32).at[:, :H2].set(w3.reshape(1, H2).astype(jnp.float32))
    b3s = b3.reshape(1).astype(jnp.float32)

    def const_spec(shape):
        return pl.BlockSpec(shape, lambda i: (0,) * len(shape))

    out = pl.pallas_call(
        regressor_kernel,
        out_shape=jax.ShapeDtypeStruct((1, B_pad), jnp.float32),
        grid=grid,
        in_specs=[
            pl.BlockSpec((tb, n_dim), lambda i: (i, 0)),          # x: batch-tiled, pipelined
            const_spec(w1p.shape), const_spec(b1p.shape),         # VMEM-resident weights/biases
            const_spec(w2p.shape), const_spec(b2p.shape),
            const_spec(w3p.shape),
            pl.BlockSpec(memory_space=pltpu.MemorySpace.SMEM),    # b3 scalar in SMEM
        ],
        out_specs=pl.BlockSpec((1, tb), lambda i: (0, i)),        # lane-dense output slab
        compiler_params=pltpu.CompilerParams(
            dimension_semantics=("parallel",),                    # megacore sharding on v7x
        ),
    )(xp, w1p, b1p, w2p, b2p, w3p, b3s)

    return out[0, :B].reshape(B, 1)


def xavier_uniform(key, fan_in, fan_out):
    # matches torch.nn.init.xavier_uniform_ bound; stored as (in, out) layout
    bound = (6.0 / (fan_in + fan_out)) ** 0.5
    return jax.random.uniform(key, (fan_in, fan_out), jnp.float32, -bound, bound)


if __name__ == "__main__":
    key = jax.random.PRNGKey(0)
    k_x, k1, k2, k3 = jax.random.split(key, 4)

    B, n_dim = 8, 16
    x = jax.random.normal(k_x, (B, n_dim), jnp.float32)

    # Deterministic parameter init (xavier-uniform weights, zero biases), like RegressorNet.fit().
    w1 = xavier_uniform(k1, n_dim, 64)
    b1 = jnp.zeros((64,), jnp.float32)
    w2 = xavier_uniform(k2, 64, 32)
    b2 = jnp.zeros((32,), jnp.float32)
    w3 = xavier_uniform(k3, 32, 1)
    b3 = jnp.zeros((1,), jnp.float32)

    out = regressor_forward(x, w1, b1, w2, b2, w3, b3)
    out = jax.block_until_ready(out)

    # Pure-JAX reference mirroring the bf16-operand / f32-accumulation path.
    h1 = jnp.maximum(
        jnp.dot(x.astype(jnp.bfloat16), w1.astype(jnp.bfloat16),
                preferred_element_type=jnp.float32) + b1, 0.0)
    h2 = jnp.maximum(
        jnp.dot(h1.astype(jnp.bfloat16), w2.astype(jnp.bfloat16),
                preferred_element_type=jnp.float32) + b2, 0.0)
    ref = h2 @ w3 + b3

    assert out.shape == (B, 1), out.shape
    assert jnp.allclose(out, ref, atol=1e-3, rtol=1e-3), (out, ref)
    print("KERNEL_OK")
</pallas_src>

<mosaic_0001>
module attributes {stable_mosaic.version = 11 : i64} {
  func.func @regressor_kernel(%arg0: i32, %arg1: memref<128x16xbf16, #tpu.memory_space<vmem>>, %arg2: memref<16x128xbf16, #tpu.memory_space<vmem>>, %arg3: memref<1x128xf32, #tpu.memory_space<vmem>>, %arg4: memref<128x128xbf16, #tpu.memory_space<vmem>>, %arg5: memref<1x128xf32, #tpu.memory_space<vmem>>, %arg6: memref<1x128xf32, #tpu.memory_space<vmem>>, %arg7: memref<1xf32, #tpu.memory_space<smem>>, %arg8: memref<1x128xf32, #tpu.memory_space<vmem>>) attributes {dimension_semantics = [#tpu.dimension_semantics<parallel>], iteration_bounds = array<i64: 1>, scalar_prefetch = 0 : i64, scratch_operands = 0 : i64, tpu.core_type = #tpu.core_type<tc>, window_params = [{transform_indices = @transform_0, window_bounds = array<i64: 128, 16>}, {pipeline_mode = #tpu.pipeline_mode<synchronous>, transform_indices = @transform_1, window_bounds = array<i64: 16, 128>}, {pipeline_mode = #tpu.pipeline_mode<synchronous>, transform_indices = @transform_2, window_bounds = array<i64: 1, 128>}, {pipeline_mode = #tpu.pipeline_mode<synchronous>, transform_indices = @transform_3, window_bounds = array<i64: 128, 128>}, {pipeline_mode = #tpu.pipeline_mode<synchronous>, transform_indices = @transform_4, window_bounds = array<i64: 1, 128>}, {pipeline_mode = #tpu.pipeline_mode<synchronous>, transform_indices = @transform_5, window_bounds = array<i64: 1, 128>}, {transform_indices = @transform_6, window_bounds = array<i64: 1>}, {transform_indices = @transform_7, window_bounds = array<i64: 1, 128>}]} {
    %c0 = arith.constant 0 : index
    %c0_0 = arith.constant 0 : index
    %0 = vector.load %arg1[%c0, %c0_0] : memref<128x16xbf16, #tpu.memory_space<vmem>>, vector<128x16xbf16>
    %c0_1 = arith.constant 0 : index
    %c0_2 = arith.constant 0 : index
    %1 = vector.load %arg2[%c0_1, %c0_2] : memref<16x128xbf16, #tpu.memory_space<vmem>>, vector<16x128xbf16>
    %cst = arith.constant dense<0.000000e+00> : vector<128x128xf32>
    %2 = tpu.matmul %0, %1, %cst {dimension_numbers = #tpu.dot_dimension_numbers<[1], [0], [0], [1], [0, 0, 1, 1], [], []>} : vector<128x16xbf16>, vector<16x128xbf16>, vector<128x128xf32> -> vector<128x128xf32>
    %c0_3 = arith.constant 0 : index
    %c0_4 = arith.constant 0 : index
    %3 = vector.load %arg3[%c0_3, %c0_4] : memref<1x128xf32, #tpu.memory_space<vmem>>, vector<1x128xf32>
    %4 = vector.broadcast %3 : vector<1x128xf32> to vector<128x128xf32>
    %5 = arith.addf %2, %4 : vector<128x128xf32>
    %cst_5 = arith.constant 0.000000e+00 : f32
    %6 = vector.broadcast %cst_5 : f32 to vector<128x128xf32>
    %7 = arith.maximumf %5, %6 : vector<128x128xf32>
    %8 = arith.truncf %7 : vector<128x128xf32> to vector<128x128xbf16>
    %c0_6 = arith.constant 0 : index
    %c0_7 = arith.constant 0 : index
    %9 = vector.load %arg4[%c0_6, %c0_7] : memref<128x128xbf16, #tpu.memory_space<vmem>>, vector<128x128xbf16>
    %cst_8 = arith.constant dense<0.000000e+00> : vector<128x128xf32>
    %10 = tpu.matmul %8, %9, %cst_8 {dimension_numbers = #tpu.dot_dimension_numbers<[1], [0], [0], [1], [0, 0, 1, 1], [], []>} : vector<128x128xbf16>, vector<128x128xbf16>, vector<128x128xf32> -> vector<128x128xf32>
    %c0_9 = arith.constant 0 : index
    %c0_10 = arith.constant 0 : index
    %11 = vector.load %arg5[%c0_9, %c0_10] : memref<1x128xf32, #tpu.memory_space<vmem>>, vector<1x128xf32>
    %12 = vector.broadcast %11 : vector<1x128xf32> to vector<128x128xf32>
    %13 = arith.addf %10, %12 : vector<128x128xf32>
    %cst_11 = arith.constant 0.000000e+00 : f32
    %14 = vector.broadcast %cst_11 : f32 to vector<128x128xf32>
    %15 = arith.maximumf %13, %14 : vector<128x128xf32>
    %c0_12 = arith.constant 0 : index
    %c0_13 = arith.constant 0 : index
    %16 = vector.load %arg6[%c0_12, %c0_13] : memref<1x128xf32, #tpu.memory_space<vmem>>, vector<1x128xf32>
    %17 = vector.broadcast %16 : vector<1x128xf32> to vector<128x128xf32>
    %18 = arith.mulf %15, %17 : vector<128x128xf32>
    %cst_14 = arith.constant dense<0.000000e+00> : vector<128xf32>
    %19 = vector.multi_reduction <add>, %18, %cst_14 [1] : vector<128x128xf32> to vector<128xf32>
    %c0_15 = arith.constant 0 : index
    %20 = memref.load %arg7[%c0_15] : memref<1xf32, #tpu.memory_space<smem>>
    %21 = vector.broadcast %20 : f32 to vector<128xf32>
    %22 = arith.addf %19, %21 : vector<128xf32>
    %23 = vector.shape_cast %22 : vector<128xf32> to vector<1x128xf32>
    %c0_16 = arith.constant 0 : index
    %c0_17 = arith.constant 0 : index
    %24 = vector.load %arg8[%c0_16, %c0_17] : memref<1x128xf32, #tpu.memory_space<vmem>>, vector<1x128xf32>
    tpu.vector_store %arg8[%c0_16, %c0_17], %23 {strides = array<i32>} : memref<1x128xf32, #tpu.memory_space<vmem>>, vector<1x128xf32>,
    return
  }
  func.func @transform_0(%arg0: i32) -> (i32, i32) {
    %c0_i32 = arith.constant 0 : i32
    %c0_i32_0 = arith.constant 0 : i32
    return %arg0, %c0_i32 : i32, i32
  }
  func.func @transform_1(%arg0: i32) -> (i32, i32) {
    %c0_i32 = arith.constant 0 : i32
    %c0_i32_0 = arith.constant 0 : i32
    %c0_i32_1 = arith.constant 0 : i32
    return %c0_i32, %c0_i32_0 : i32, i32
  }
  func.func @transform_2(%arg0: i32) -> (i32, i32) {
    %c0_i32 = arith.constant 0 : i32
    %c0_i32_0 = arith.constant 0 : i32
    %c0_i32_1 = arith.constant 0 : i32
    return %c0_i32, %c0_i32_0 : i32, i32
  }
  func.func @transform_3(%arg0: i32) -> (i32, i32) {
    %c0_i32 = arith.constant 0 : i32
    %c0_i32_0 = arith.constant 0 : i32
    %c0_i32_1 = arith.constant 0 : i32
    return %c0_i32, %c0_i32_0 : i32, i32
  }
  func.func @transform_4(%arg0: i32) -> (i32, i32) {
    %c0_i32 = arith.constant 0 : i32
    %c0_i32_0 = arith.constant 0 : i32
    %c0_i32_1 = arith.constant 0 : i32
    return %c0_i32, %c0_i32_0 : i32, i32
  }
  func.func @transform_5(%arg0: i32) -> (i32, i32) {
    %c0_i32 = arith.constant 0 : i32
    %c0_i32_0 = arith.constant 0 : i32
    %c0_i32_1 = arith.constant 0 : i32
    return %c0_i32, %c0_i32_0 : i32, i32
  }
  func.func @transform_6(%arg0: i32) -> i32 {
    %c0_i32 = arith.constant 0 : i32
    %c0_i32_0 = arith.constant 0 : i32
    return %c0_i32 : i32
  }
  func.func @transform_7(%arg0: i32) -> (i32, i32) {
    %c0_i32 = arith.constant 0 : i32
    %c0_i32_0 = arith.constant 0 : i32
    return %c0_i32, %arg0 : i32, i32
  }
}

</mosaic_0001>

<llo_original>
// kernel: tpu_custom_call.1
$region0: #{tpu_custom_call.1}
  #allocation0 [shape = 'u32[]', space=smem, size = 0x4, offset = 0x4, fixed_abs, tag = 'smem constant byte address 0x4 - core index']
  #allocation1 [shape = 'u32[72,128]{1,0:T(1,128)}', space=vmem, size = 0x9000, scoped, tag = 'internal scratch']
  #allocation2 [shape = 'f32[1]{0:T(128)S(6)}', space=smem, size = 0x200, scoped, tag = 'scoped memory for tpu_custom_call.1']
  %s0 = inlined_call_operand.vmem [shape: bf16[128,16], index: 0, kind: input, shape index: {}]
  %s1 = inlined_call_operand.vmem [shape: bf16[16,128], index: 1, kind: input, shape index: {}]
  %s2 = inlined_call_operand.vmem [shape: f32[1,128], index: 2, kind: input, shape index: {}]
  %s3 = inlined_call_operand.vmem [shape: bf16[128,128], index: 3, kind: input, shape index: {}]
  %s4 = inlined_call_operand.vmem [shape: f32[1,128], index: 4, kind: input, shape index: {}]
  %s5 = inlined_call_operand.vmem [shape: f32[1,128], index: 5, kind: input, shape index: {}]
  %s6 = inlined_call_operand.<no memory space> [shape: f32[1], index: 6, kind: input, shape index: {}]
  %s7 = inlined_call_operand.hbm [shape: f32[1,128], index: 7, kind: output, shape index: {}]
  %s8 = sld [smem:[#allocation0]]
  $region38: #{tpu_custom_call.1} parent=0
    _
  %s10 = ssub.s32 1, %s8
  %s11 = scalar_select 0, %s10, %s8
  %12 = sst [smem:[#allocation2]] %s6
  $region1: #{tpu_custom_call.1} parent=0
    #allocation3 [shape = 'u8[512]{0}', space=vmem, size = 0x400, scoped, tag = 'output window, operand 0, single buffered']
    #allocation4 [shape = 's32[1]{0}', space=sflag, size = 0x4, scoped, tag = 'scoped memory for tpu_custom_call.1']
    %13 = vsyncpa [#allocation4], 0
    // Predicated region
    $region2: #{tpu_custom_call.1} parent=1 // pred_check
      _
    $region3: #{tpu_custom_call.1} parent=1 // pred_check_branch
      %15 = sbr.rel (0) target = $region5
    $region4: #{tpu_custom_call.1} parent=1 // pred_region
      _
    $region5: #{tpu_custom_call.1} parent=1 // pred_fallthru
      _
    // Predicated region
    $region6: #{tpu_custom_call.1} parent=1 // pred_check
      _
    $region7: #{tpu_custom_call.1} parent=1 // pred_check_branch
      %17 = sbr.rel (0) target = $region9
    $region8: #{tpu_custom_call.1} parent=1 // pred_region
      _
    $region9: #{tpu_custom_call.1} parent=1 // pred_fallthru
      _
    // Predicated region
    $region10: #{tpu_custom_call.1} parent=1 // pred_check
      _
    $region11: #{tpu_custom_call.1} parent=1 // pred_check_branch
      %19 = sbr.rel (0) target = $region13
    $region12: #{tpu_custom_call.1} parent=1 // pred_region
      _
    $region13: #{tpu_custom_call.1} parent=1 // pred_fallthru
      _
    // Predicated region
    $region14: #{tpu_custom_call.1} parent=1 // pred_check
      _
    $region15: #{tpu_custom_call.1} parent=1 // pred_check_branch
      %21 = sbr.rel (0) target = $region17
    $region16: #{tpu_custom_call.1} parent=1 // pred_region
      _
    $region17: #{tpu_custom_call.1} parent=1 // pred_fallthru
      _
    // Predicated region
    $region18: #{tpu_custom_call.1} parent=1 // pred_check
      _
    $region19: #{tpu_custom_call.1} parent=1 // pred_check_branch
      %23 = sbr.rel (0) target = $region21
    $region20: #{tpu_custom_call.1} parent=1 // pred_region
      _
    $region21: #{tpu_custom_call.1} parent=1 // pred_fallthru
      _
    // Predicated region
    $region22: #{tpu_custom_call.1} parent=1 // pred_check
      _
    $region23: #{tpu_custom_call.1} parent=1 // pred_check_branch
      %25 = sbr.rel (0) target = $region25
    $region24: #{tpu_custom_call.1} parent=1 // pred_region
      _
    $region25: #{tpu_custom_call.1} parent=1 // pred_fallthru
      _
    // Predicated region
    $region26: #{tpu_custom_call.1} parent=1 // pred_check
      _
    $region27: #{tpu_custom_call.1} parent=1 // pred_check_branch
      %27 = sbr.rel (0) target = $region29
    $region28: #{tpu_custom_call.1} parent=1 // pred_region
      _
    $region29: #{tpu_custom_call.1} parent=1 // pred_fallthru
      _
    %v29 = vld [vmem:[%s0] sm:$0xf]
    %v30 = vld [vmem:[%s0 + $0x4] sm:$0xf]
    %v31 = vld [vmem:[%s0 + $0x8] sm:$0xf]
    %v32 = vld [vmem:[%s0 + $0xc] sm:$0xf]
    %v33 = vld [vmem:[%s0 + $0x10] sm:$0xf]
    %v34 = vld [vmem:[%s0 + $0x14] sm:$0xf]
    %v35 = vld [vmem:[%s0 + $0x18] sm:$0xf]
    %v36 = vld [vmem:[%s0 + $0x1c] sm:$0xf]
    %v37 = vld [vmem:[%s0 + $0x20] sm:$0xf]
    %v38 = vld [vmem:[%s0 + $0x24] sm:$0xf]
    %v39 = vld [vmem:[%s0 + $0x28] sm:$0xf]
    %v40 = vld [vmem:[%s0 + $0x2c] sm:$0xf]
    %v41 = vld [vmem:[%s0 + $0x30] sm:$0xf]
    %v42 = vld [vmem:[%s0 + $0x34] sm:$0xf]
    %v43 = vld [vmem:[%s0 + $0x38] sm:$0xf]
    %v44 = vld [vmem:[%s0 + $0x3c] sm:$0xf]
    %v45 = vld [vmem:[%s1] sm:$0xf]
    %v46 = vld [vmem:[%s1 + $0x4] sm:$0xf]
    %v47 = vld [vmem:[%s2] sm:$0x1]
    %v49 = vperm.slane %v47, 0
    %v67 = vunpack.c.l.b16 %v29
    %v68 = vunpack.c.l.b16 %v30
    %v69 = vunpack.c.l.b16 %v31
    %v70 = vunpack.c.l.b16 %v32
    %v71 = vunpack.c.l.b16 %v33
    %v72 = vunpack.c.l.b16 %v34
    %v73 = vunpack.c.l.b16 %v35
    %v74 = vunpack.c.l.b16 %v36
    %v75 = vunpack.c.l.b16 %v37
    %v76 = vunpack.c.l.b16 %v38
    %v77 = vunpack.c.l.b16 %v39
    %v78 = vunpack.c.l.b16 %v40
    %v79 = vunpack.c.l.b16 %v41
    %v80 = vunpack.c.l.b16 %v42
    %v81 = vunpack.c.l.b16 %v43
    %v82 = vunpack.c.l.b16 %v44
    %v83 = vpack.c.b16 %v68, %v67
    %v84 = vpack.c.b16 %v70, %v69
    %v85 = vpack.c.b16 %v72, %v71
    %v86 = vpack.c.b16 %v74, %v73
    %v87 = vpack.c.b16 %v76, %v75
    %v88 = vpack.c.b16 %v78, %v77
    %v89 = vpack.c.b16 %v80, %v79
    %v90 = vpack.c.b16 %v82, %v81
    %v93 = vunpack.c.l.b16 %v45
    %v94 = vunpack.c.l.b16 %v46
    %v95 = vpack.c.b16 %v94, %v93
    %vm97 = vcmask 130048
    %v99 = vsel %vm97, %v83, 0
    %v102 = vsel %vm97, %v84, 0
    %v105 = vsel %vm97, %v85, 0
    %v108 = vsel %vm97, %v86, 0
    %v111 = vsel %vm97, %v87, 0
    %v114 = vsel %vm97, %v88, 0
    %v117 = vsel %vm97, %v89, 0
    %v120 = vsel %vm97, %v90, 0
    %122 = vmatpush.bf16.msra.mxu0 0
    %123 = vmatpush.bf16.msra.mxu0 0
    %124 = vmatpush.bf16.msra.mxu0 0
    %125 = vmatpush.bf16.msra.mxu0 0
    %126 = vmatpush.bf16.msra.mxu0 0
    %127 = vmatpush.bf16.msra.mxu0 0
    %128 = vmatpush.bf16.msra.mxu0 0
    %129 = vmatpush.bf16.msra.mxu0 %v95
    %130 = vmatmul.bf16.gmra.mxu0 %v99
    %v131 = vpop.f32.mrf.mxu0
    %v132 = vadd.f32 %v49, %v131
    %v133 = vpop.f32.mrf.mxu0
    %v134 = vadd.f32 %v49, %v133
    %135 = vmatmul.bf16.gmra.mxu0 %v102
    %v136 = vpop.f32.mrf.mxu0
    %v137 = vadd.f32 %v49, %v136
    %v138 = vpop.f32.mrf.mxu0
    %v139 = vadd.f32 %v49, %v138
    %140 = vmatmul.bf16.gmra.mxu0 %v105
    %v141 = vpop.f32.mrf.mxu0
    %v142 = vadd.f32 %v49, %v141
    %v143 = vpop.f32.mrf.mxu0
    %v144 = vadd.f32 %v49, %v143
    %145 = vmatmul.bf16.gmra.mxu0 %v108
    %v146 = vpop.f32.mrf.mxu0
    %v147 = vadd.f32 %v49, %v146
    %v148 = vpop.f32.mrf.mxu0
    %v149 = vadd.f32 %v49, %v148
    %150 = vmatmul.bf16.gmra.mxu0 %v111
    %v151 = vpop.f32.mrf.mxu0
    %v152 = vadd.f32 %v49, %v151
    %v153 = vpop.f32.mrf.mxu0
    %v154 = vadd.f32 %v49, %v153
    %155 = vmatmul.bf16.gmra.mxu0 %v114
    %v156 = vpop.f32.mrf.mxu0
    %v157 = vadd.f32 %v49, %v156
    %v158 = vpop.f32.mrf.mxu0
    %v159 = vadd.f32 %v49, %v158
    %160 = vmatmul.bf16.gmra.mxu0 %v117
    %v161 = vpop.f32.mrf.mxu0
    %v162 = vadd.f32 %v49, %v161
    %v163 = vpop.f32.mrf.mxu0
    %v164 = vadd.f32 %v49, %v163
    %165 = vmatmul.bf16.gmra.mxu0 %v120
    %v166 = vpop.f32.mrf.mxu0
    %v167 = vadd.f32 %v49, %v166
    %v168 = vpop.f32.mrf.mxu0
    %v169 = vadd.f32 %v49, %v168
    %170 = vdwg.mxu0
    %v171 = vmax.f32 %v132, 0.0
    %v172 = vmax.f32 %v134, 0.0
    %v173 = vmax.f32 %v137, 0.0
    %v174 = vmax.f32 %v139, 0.0
    %v175 = vmax.f32 %v142, 0.0
    %v176 = vmax.f32 %v144, 0.0
    %v177 = vmax.f32 %v147, 0.0
    %v178 = vmax.f32 %v149, 0.0
    %v179 = vmax.f32 %v152, 0.0
    %v180 = vmax.f32 %v154, 0.0
    %v181 = vmax.f32 %v157, 0.0
    %v182 = vmax.f32 %v159, 0.0
    %v183 = vmax.f32 %v162, 0.0
    %v184 = vmax.f32 %v164, 0.0
    %v185 = vmax.f32 %v167, 0.0
    %v186 = vmax.f32 %v169, 0.0
    %v187 = vpack.c.bf16 %v172, %v171
    %v188 = vpack.c.bf16 %v174, %v173
    %v189 = vpack.c.bf16 %v176, %v175
    %v190 = vpack.c.bf16 %v178, %v177
    %v191 = vpack.c.bf16 %v180, %v179
    %v192 = vpack.c.bf16 %v182, %v181
    %v193 = vpack.c.bf16 %v184, %v183
    %v194 = vpack.c.bf16 %v186, %v185
    %v195 = vld [vmem:[%s3] sm:$0xf]
    %v196 = vld [vmem:[%s3 + $0x4] sm:$0xf]
    %v197 = vld [vmem:[%s3 + $0x8] sm:$0xf]
    %v198 = vld [vmem:[%s3 + $0xc] sm:$0xf]
    %v199 = vld [vmem:[%s3 + $0x10] sm:$0xf]
    %v200 = vld [vmem:[%s3 + $0x14] sm:$0xf]
    %v201 = vld [vmem:[%s3 + $0x18] sm:$0xf]
    %v202 = vld [vmem:[%s3 + $0x1c] sm:$0xf]
    %v203 = vld [vmem:[%s3 + $0x20] sm:$0xf]
    %v204 = vld [vmem:[%s3 + $0x24] sm:$0xf]
    %v205 = vld [vmem:[%s3 + $0x28] sm:$0xf]
    %v206 = vld [vmem:[%s3 + $0x2c] sm:$0xf]
    %v207 = vld [vmem:[%s3 + $0x30] sm:$0xf]
    %v208 = vld [vmem:[%s3 + $0x34] sm:$0xf]
    %v209 = vld [vmem:[%s3 + $0x38] sm:$0xf]
    %v210 = vld [vmem:[%s3 + $0x3c] sm:$0xf]
    %v211 = vld [vmem:[%s4] sm:$0x1]
    %v213 = vperm.slane %v211, 0
    %v231 = vunpack.c.l.b16 %v195
    %v232 = vunpack.c.l.b16 %v196
    %v233 = vunpack.c.l.b16 %v197
    %v234 = vunpack.c.l.b16 %v198
    %v235 = vunpack.c.l.b16 %v199
    %v236 = vunpack.c.l.b16 %v200
    %v237 = vunpack.c.l.b16 %v201
    %v238 = vunpack.c.l.b16 %v202
    %v239 = vunpack.c.l.b16 %v203
    %v240 = vunpack.c.l.b16 %v204
    %v241 = vunpack.c.l.b16 %v205
    %v242 = vunpack.c.l.b16 %v206
    %v243 = vunpack.c.l.b16 %v207
    %v244 = vunpack.c.l.b16 %v208
    %v245 = vunpack.c.l.b16 %v209
    %v246 = vunpack.c.l.b16 %v210
    %v247 = vpack.c.b16 %v232, %v231
    %v248 = vpack.c.b16 %v234, %v233
    %v249 = vpack.c.b16 %v236, %v235
    %v250 = vpack.c.b16 %v238, %v237
    %v251 = vpack.c.b16 %v240, %v239
    %v252 = vpack.c.b16 %v242, %v241
    %v253 = vpack.c.b16 %v244, %v243
    %v254 = vpack.c.b16 %v246, %v245
    %263 = vmatpush.bf16.msra.mxu0 %v254
    %264 = vmatpush.bf16.msra.mxu0 %v253
    %265 = vmatpush.bf16.msra.mxu0 %v252
    %266 = vmatpush.bf16.msra.mxu0 %v251
    %267 = vmatpush.bf16.msra.mxu0 %v250
    %268 = vmatpush.bf16.msra.mxu0 %v249
    %269 = vmatpush.bf16.msra.mxu0 %v248
    %270 = vmatpush.bf16.msra.mxu0 %v247
    %271 = vmatmul.bf16.gmra.mxu0 %v187
    %v272 = vpop.f32.mrf.mxu0
    %v273 = vadd.f32 %v213, %v272
    %v274 = vpop.f32.mrf.mxu0
    %v275 = vadd.f32 %v213, %v274
    %276 = vmatmul.bf16.gmra.mxu0 %v188
    %v277 = vpop.f32.mrf.mxu0
    %v278 = vadd.f32 %v213, %v277
    %v279 = vpop.f32.mrf.mxu0
    %v280 = vadd.f32 %v213, %v279
    %281 = vmatmul.bf16.gmra.mxu0 %v189
    %v282 = vpop.f32.mrf.mxu0
    %v283 = vadd.f32 %v213, %v282
    %v284 = vpop.f32.mrf.mxu0
    %v285 = vadd.f32 %v213, %v284
    %286 = vmatmul.bf16.gmra.mxu0 %v190
    %v287 = vpop.f32.mrf.mxu0
    %v288 = vadd.f32 %v213, %v287
    %v289 = vpop.f32.mrf.mxu0
    %v290 = vadd.f32 %v213, %v289
    %291 = vmatmul.bf16.gmra.mxu0 %v191
    %v292 = vpop.f32.mrf.mxu0
    %v293 = vadd.f32 %v213, %v292
    %v294 = vpop.f32.mrf.mxu0
    %v295 = vadd.f32 %v213, %v294
    %296 = vmatmul.bf16.gmra.mxu0 %v192
    %v297 = vpop.f32.mrf.mxu0
    %v298 = vadd.f32 %v213, %v297
    %v299 = vpop.f32.mrf.mxu0
    %v300 = vadd.f32 %v213, %v299
    %301 = vmatmul.bf16.gmra.mxu0 %v193
    %v302 = vpop.f32.mrf.mxu0
    %v303 = vadd.f32 %v213, %v302
    %v304 = vpop.f32.mrf.mxu0
    %v305 = vadd.f32 %v213, %v304
    %306 = vmatmul.bf16.gmra.mxu0 %v194
    %v307 = vpop.f32.mrf.mxu0
    %v308 = vadd.f32 %v213, %v307
    %v309 = vpop.f32.mrf.mxu0
    %v310 = vadd.f32 %v213, %v309
    %311 = vdwg.mxu0
    %v312 = vmax.f32 %v273, 0.0
    %v313 = vmax.f32 %v275, 0.0
    %v314 = vmax.f32 %v278, 0.0
    %v315 = vmax.f32 %v280, 0.0
    %v316 = vmax.f32 %v283, 0.0
    %v317 = vmax.f32 %v285, 0.0
    %v318 = vmax.f32 %v288, 0.0
    %v319 = vmax.f32 %v290, 0.0
    %v320 = vmax.f32 %v293, 0.0
    %v321 = vmax.f32 %v295, 0.0
    %v322 = vmax.f32 %v298, 0.0
    %v323 = vmax.f32 %v300, 0.0
    %v324 = vmax.f32 %v303, 0.0
    %v325 = vmax.f32 %v305, 0.0
    %v326 = vmax.f32 %v308, 0.0
    %v327 = vmax.f32 %v310, 0.0
    %v328 = vld [vmem:[%s5] sm:$0x1]
    %v330 = vperm.slane %v328, 0
    %v332 = vmul.f32 %v312, %v330
    %v333 = vmul.f32 %v313, %v330
    %v334 = vmul.f32 %v314, %v330
    %v335 = vmul.f32 %v315, %v330
    %v336 = vmul.f32 %v316, %v330
    %v337 = vmul.f32 %v317, %v330
    %v338 = vmul.f32 %v318, %v330
    %v339 = vmul.f32 %v319, %v330
    %v340 = vmul.f32 %v320, %v330
    %v341 = vmul.f32 %v321, %v330
    %v342 = vmul.f32 %v322, %v330
    %v343 = vmul.f32 %v323, %v330
    %v344 = vmul.f32 %v324, %v330
    %v345 = vmul.f32 %v325, %v330
    %v346 = vmul.f32 %v326, %v330
    %v347 = vmul.f32 %v327, %v330
    %348 = vadd.xlane.f32.xlu0 %v332
    %v349 = vpop.xlane.xlu0 %348
    %350 = vadd.xlane.f32.xlu0 %v333
    %v351 = vpop.xlane.xlu0 %350
    %352 = vadd.xlane.f32.xlu0 %v334
    %v353 = vpop.xlane.xlu0 %352
    %354 = vadd.xlane.f32.xlu0 %v335
    %v355 = vpop.xlane.xlu0 %354
    %356 = vadd.xlane.f32.xlu0 %v336
    %v357 = vpop.xlane.xlu0 %356
    %358 = vadd.xlane.f32.xlu0 %v337
    %v359 = vpop.xlane.xlu0 %358
    %360 = vadd.xlane.f32.xlu0 %v338
    %v361 = vpop.xlane.xlu0 %360
    %362 = vadd.xlane.f32.xlu0 %v339
    %v363 = vpop.xlane.xlu0 %362
    %364 = vadd.xlane.f32.xlu0 %v340
    %v365 = vpop.xlane.xlu0 %364
    %366 = vadd.xlane.f32.xlu0 %v341
    %v367 = vpop.xlane.xlu0 %366
    %368 = vadd.xlane.f32.xlu0 %v342
    %v369 = vpop.xlane.xlu0 %368
    %370 = vadd.xlane.f32.xlu0 %v343
    %v371 = vpop.xlane.xlu0 %370
    %372 = vadd.xlane.f32.xlu0 %v344
    %v373 = vpop.xlane.xlu0 %372
    %374 = vadd.xlane.f32.xlu0 %v345
    %v375 = vpop.xlane.xlu0 %374
    %376 = vadd.xlane.f32.xlu0 %v346
    %v377 = vpop.xlane.xlu0 %376
    %378 = vadd.xlane.f32.xlu0 %v347
    %v379 = vpop.xlane.xlu0 %378
    %s380 = sld [smem:[#allocation2]]
    %v381 = vstv %s380
    %v382 = vadd.f32 %v349, %v381
    %v383 = vadd.f32 %v351, %v381
    %v384 = vadd.f32 %v353, %v381
    %v385 = vadd.f32 %v355, %v381
    %v386 = vadd.f32 %v357, %v381
    %v387 = vadd.f32 %v359, %v381
    %v388 = vadd.f32 %v361, %v381
    %v389 = vadd.f32 %v363, %v381
    %v390 = vadd.f32 %v365, %v381
    %v391 = vadd.f32 %v367, %v381
    %v392 = vadd.f32 %v369, %v381
    %v393 = vadd.f32 %v371, %v381
    %v394 = vadd.f32 %v373, %v381
    %v395 = vadd.f32 %v375, %v381
    %v396 = vadd.f32 %v377, %v381
    %v397 = vadd.f32 %v379, %v381
    %v414 = vlaneseq
    %v415 = vand.u32 %v414, 127
    %v416 = vperm.slane %v382, %v415
    %v417 = vadd.s32 %v415, 4294967288
    %v418 = vperm.slane %v383, %v417
    %vm419 = vcmask 130112
    %v420 = vsel %vm419, %v418, %v416
    %v421 = vadd.s32 %v415, 4294967280
    %v422 = vperm.slane %v384, %v421
    %vm423 = vcmask 195712
    %v424 = vsel %vm423, %v422, %v420
    %v425 = vadd.s32 %v415, 4294967272
    %v426 = vperm.slane %v385, %v425
    %vm427 = vcmask 261312
    %v428 = vsel %vm427, %v426, %v424
    %v429 = vadd.s32 %v415, 4294967264
    %v430 = vperm.slane %v386, %v429
    %vm431 = vcmask 326912
    %v432 = vsel %vm431, %v430, %v428
    %v433 = vadd.s32 %v415, 4294967256
    %v434 = vperm.slane %v387, %v433
    %vm435 = vcmask 392512
    %v436 = vsel %vm435, %v434, %v432
    %v437 = vadd.s32 %v415, 4294967248
    %v438 = vperm.slane %v388, %v437
    %vm439 = vcmask 458112
    %v440 = vsel %vm439, %v438, %v436
    %v441 = vadd.s32 %v415, 4294967240
    %v442 = vperm.slane %v389, %v441
    %vm443 = vcmask 523712
    %v444 = vsel %vm443, %v442, %v440
    %v445 = vadd.s32 %v415, 4294967232
    %v446 = vperm.slane %v390, %v445
    %vm447 = vcmask 589312
    %v448 = vsel %vm447, %v446, %v444
    %v449 = vadd.s32 %v415, 4294967224
    %v450 = vperm.slane %v391, %v449
    %vm451 = vcmask 654912
    %v452 = vsel %vm451, %v450, %v448
    %v453 = vadd.s32 %v415, 4294967216
    %v454 = vperm.slane %v392, %v453
    %vm455 = vcmask 720512
    %v456 = vsel %vm455, %v454, %v452
    %v457 = vadd.s32 %v415, 4294967208
    %v458 = vperm.slane %v393, %v457
    %vm459 = vcmask 786112
    %v460 = vsel %vm459, %v458, %v456
    %v461 = vadd.s32 %v415, 4294967200
    %v462 = vperm.slane %v394, %v461
    %vm463 = vcmask 851712
    %v464 = vsel %vm463, %v462, %v460
    %v465 = vadd.s32 %v415, 4294967192
    %v466 = vperm.slane %v395, %v465
    %vm467 = vcmask 917312
    %v468 = vsel %vm467, %v466, %v464
    %v469 = vadd.s32 %v415, 4294967184
    %v470 = vperm.slane %v396, %v469
    %vm471 = vcmask 982912
    %v472 = vsel %vm471, %v470, %v468
    %v473 = vadd.s32 %v415, 4294967176
    %v474 = vperm.slane %v397, %v473
    %vm475 = vcmask 1048512
    %v476 = vsel %vm475, %v474, %v472
    %478 = vst [vmem:[#allocation3] sm:$0x1] %v476
    // Predicated region
    $region30: #{tpu_custom_call.1} parent=1 // pred_check
      _
    $region31: #{tpu_custom_call.1} parent=1 // pred_check_branch
      %480 = sbr.rel (0) target = $region33
    $region32: #{tpu_custom_call.1} parent=1 // pred_region
      %482 = vsyncadd [#allocation4], 0
      %s484 = sshll.u32 [#allocation3], 4
      %s485 = int_to_ptr.vmem [resolvable:$true] %s484
      %s486 = sshll.u32 %s7, 4
      %s487 = int_to_ptr.hbm [resolvable:$true] %s486
      %489 = dma.vmem_to_hbm [thread:$0]  %s485, 16, %s487, [#allocation4]
    $region33: #{tpu_custom_call.1} parent=1 // pred_fallthru
      _
    // Predicated region
    $region34: #{tpu_custom_call.1} parent=1 // pred_check
      _
    $region35: #{tpu_custom_call.1} parent=1 // pred_check_branch
      %491 = sbr.rel (0) target = $region37
    $region36: #{tpu_custom_call.1} parent=1 // pred_region
      %493 = dma.done [#allocation4], 16
    $region37: #{tpu_custom_call.1} parent=1 // pred_fallthru
      _
    %494 = vsyncpa [#allocation4], 1

</llo_original>
